<compile_context>
chip_gen: v5e
topology: v5e:2x2
jax: 0.10.0
libtpu: 0.0.40
codegen_flags: <defaults>
</compile_context>

<pallas_src>
import functools
import math

import jax
import jax.numpy as jnp
from jax.experimental import pallas as pl
from jax.experimental.pallas import tpu as pltpu

LANE = 128
NSPLIT = 2                       # grid splits (v7x has 2 TensorCores)
TARGET_BLOCK_ROWS = 1024         # binary: 1024 x 128 f32 = 512 KiB per input block
TARGET_BLOCK_ELEMS = 128 * 1024  # multiclass: C * block_s ~= 128K elems (512 KiB f32)


def _cdiv(a, b):
    return -(-a // b)


def _sublane_align(dtype):
    # rows-per-tile granularity for packed dtypes: f32 -> 8, bf16 -> 16, int8 -> 32
    return max(8, 32 // jnp.dtype(dtype).itemsize)


# ---------------------------------------------------------------------------
# BinaryDice: streaming sums of x*y, y*y, x*x over a flat (rows, 128) view.
# ---------------------------------------------------------------------------
def _dice_sums_kernel(x_ref, y_ref, xy_ref, yy_ref, xx_ref, *,
                      block_rows, steps, total_rows, need_mask):
    """Accumulate per-lane partial sums of x*y, y*y, x*x into (8,128) outputs."""
    s = pl.program_id(0)   # parallel split
    t = pl.program_id(1)   # reduction step within the split

    @pl.when(t == 0)
    def _init():
        xy_ref[...] = jnp.zeros_like(xy_ref)
        yy_ref[...] = jnp.zeros_like(yy_ref)
        xx_ref[...] = jnp.zeros_like(xx_ref)

    x = x_ref[...].astype(jnp.float32)
    y = y_ref[...].astype(jnp.float32)

    if need_mask:
        # Zero out rows past the end of the logical array.  Covers the tail
        # block and fully out-of-range (clamped) blocks of the second split.
        start = (s * steps + t) * block_rows
        row_ids = start + jax.lax.broadcasted_iota(
            jnp.int32, (block_rows, LANE), 0)
        valid = row_ids < total_rows
        x = jnp.where(valid, x, 0.0)
        y = jnp.where(valid, y, 0.0)

    # Pure VPU adds: fold groups of 8 rows (one vreg each) into the (8,128)
    # resident accumulator; the expensive cross-lane reduce is deferred.
    g = block_rows // 8
    xy_ref[...] += jnp.sum((x * y).reshape(g, 8, LANE), axis=0)
    yy_ref[...] += jnp.sum((y * y).reshape(g, 8, LANE), axis=0)
    xx_ref[...] += jnp.sum((x * x).reshape(g, 8, LANE), axis=0)


def _binary_dice_sums(logits, target):
    """Pallas streaming reduction: returns (sum(x*y), sum(y*y), sum(x*x)) in f32."""
    x = logits.reshape(-1)
    y = target.reshape(-1)
    n = x.shape[0]

    # Minimal lane padding, only when the flat size is not a multiple of 128
    # (zero padding is sum-neutral).  Aligned sizes reshape for free (no copy).
    rem = (-n) % LANE
    if rem:
        x = jnp.pad(x, (0, rem))
        y = jnp.pad(y, (0, rem))
    rows = (n + rem) // LANE
    x2 = x.reshape(rows, LANE)
    y2 = y.reshape(rows, LANE)

    align = max(_sublane_align(x2.dtype), _sublane_align(y2.dtype))
    block_rows = min(TARGET_BLOCK_ROWS, _cdiv(rows, align) * align)
    total_blocks = _cdiv(rows, block_rows)
    steps = _cdiv(total_blocks, NSPLIT)
    need_mask = (NSPLIT * steps * block_rows) != rows

    def in_map(s, t):
        # Clamp fully out-of-range logical blocks onto the last valid block;
        # their contribution is zeroed by the in-kernel mask.
        return (jnp.minimum(s * steps + t, total_blocks - 1), 0)

    kernel = functools.partial(
        _dice_sums_kernel, block_rows=block_rows, steps=steps,
        total_rows=rows, need_mask=need_mask)

    part_shape = jax.ShapeDtypeStruct((NSPLIT * 8, LANE), jnp.float32)
    out_spec = pl.BlockSpec((8, LANE), lambda s, t: (s, 0))

    xy, yy, xx = pl.pallas_call(
        kernel,
        out_shape=(part_shape, part_shape, part_shape),
        grid_spec=pltpu.PrefetchScalarGridSpec(
            num_scalar_prefetch=0,
            grid=(NSPLIT, steps),
            in_specs=[
                pl.BlockSpec((block_rows, LANE), in_map),
                pl.BlockSpec((block_rows, LANE), in_map),
            ],
            out_specs=(out_spec, out_spec, out_spec),
        ),
        compiler_params=pltpu.CompilerParams(
            dimension_semantics=("parallel", "arbitrary"),
        ),
    )(x2, y2)

    # One final cross-lane reduction over 2*8*128 partials, outside the hot loop.
    return jnp.sum(xy), jnp.sum(yy), jnp.sum(xx)


def binary_dice(logits, target, smooth=1e-5):
    """Pallas equivalent of BinaryDice.forward -> (dice, loss) scalars."""
    assert logits.shape[0] == target.shape[0], \
        "logits & Target batch size don't match"
    intersect, y_sum, z_sum = _binary_dice_sums(logits, target)
    dice = (2.0 * intersect + smooth) / (z_sum + y_sum + smooth)
    return dice, 1.0 - dice


# ---------------------------------------------------------------------------
# Dice (multiclass): fused softmax + all-class sums in a single streaming pass.
# ---------------------------------------------------------------------------
def _dice_softmax_sums_kernel(x_ref, y_ref, out_ref, *, block_s, steps,
                              s_blocks, total_blocks, s_valid, need_mask):
    """Per-block: softmax over classes, then accumulate p*y, y*y, p*p per class.

    x_ref/y_ref: (C, block_s) logits / one-hot target block.
    out_ref:     (3, C, block_s) resident VMEM accumulator (per split).
    """
    split = pl.program_id(0)   # parallel split
    t = pl.program_id(1)       # reduction step within the split

    @pl.when(t == 0)
    def _init():
        out_ref[...] = jnp.zeros_like(out_ref)

    x = x_ref[...].astype(jnp.float32)   # (C, block_s)
    y = y_ref[...].astype(jnp.float32)

    # Numerically-stable softmax over the class (sublane) axis.  exp / recip go
    # to the EUP, the max/sum over a handful of sublanes to the XLU — both are
    # hidden under the input DMA of the next block.
    m = jnp.max(x, axis=0, keepdims=True)
    e = jnp.exp(x - m)
    p = e * (1.0 / jnp.sum(e, axis=0, keepdims=True))

    if need_mask:
        # Mask padded spatial columns and clamped (duplicate) blocks.
        flat = split * steps + t
        col = ((flat % s_blocks) * block_s
               + jax.lax.broadcasted_iota(jnp.int32, x.shape, 1))
        valid = jnp.logical_and(flat < total_blocks, col < s_valid)
        p = jnp.where(valid, p, 0.0)
        y = jnp.where(valid, y, 0.0)

    # Pure VPU accumulation into the resident full-width accumulator; the
    # cross-lane reduce happens once in the wrapper.
    out_ref[0] += p * y     # intersect partials
    out_ref[1] += y * y     # y_sum partials
    out_ref[2] += p * p     # z_sum partials


def _dice_softmax_sums(logits3, target3):
    """logits3/target3: (B, C, S).  Returns (3, C) f32 sums:
    [sum(softmax(logits)*target), sum(target^2), sum(softmax(logits)^2)] per class."""
    B, C, S = logits3.shape

    # Lane-dense block width; total block elems ~ TARGET_BLOCK_ELEMS.
    cols_budget = max(LANE, (TARGET_BLOCK_ELEMS // C) // LANE * LANE)
    s_lane = _cdiv(S, LANE) * LANE
    block_s = min(s_lane, cols_budget)
    s_blocks = _cdiv(s_lane, block_s)
    s_pad = s_blocks * block_s

    x = logits3
    y = target3
    if s_pad != S:
        pad = ((0, 0), (0, 0), (0, s_pad - S))
        x = jnp.pad(x, pad)
        y = jnp.pad(y, pad)

    total_blocks = B * s_blocks
    steps = _cdiv(total_blocks, NSPLIT)
    need_mask = (NSPLIT * steps != total_blocks) or (s_pad != S)

    def in_map(split, t):
        flat = jnp.minimum(split * steps + t, total_blocks - 1)
        return (flat // s_blocks, 0, flat % s_blocks)

    kernel = functools.partial(
        _dice_softmax_sums_kernel, block_s=block_s, steps=steps,
        s_blocks=s_blocks, total_blocks=total_blocks, s_valid=S,
        need_mask=need_mask)

    part = pl.pallas_call(
        kernel,
        out_shape=jax.ShapeDtypeStruct((NSPLIT, 3, C, block_s), jnp.float32),
        grid_spec=pltpu.PrefetchScalarGridSpec(
            num_scalar_prefetch=0,
            grid=(NSPLIT, steps),
            in_specs=[
                pl.BlockSpec((None, C, block_s), in_map),
                pl.BlockSpec((None, C, block_s), in_map),
            ],
            out_specs=pl.BlockSpec((None, 3, C, block_s),
                                   lambda s, t: (s, 0, 0, 0)),
        ),
        compiler_params=pltpu.CompilerParams(
            dimension_semantics=("parallel", "arbitrary"),
        ),
    )(x, y)

    # Final reduce over (split, lane) partials -> (3, C), outside the hot loop.
    return jnp.sum(part, axis=(0, 3))


def dice_forward(logits, target, num_classes, weight=None, ignore_index=(0,),
                 smooth=1e-5):
    """Pallas equivalent of Dice.forward -> (mean_dice, mean_loss, cls_dice, cls_loss)."""
    assert logits.shape == target.shape, "logits & Target shape do not match"
    B, C = logits.shape[0], logits.shape[1]
    S = int(math.prod(logits.shape[2:]))

    sums = _dice_softmax_sums(logits.reshape(B, C, S), target.reshape(B, C, S))
    intersect, y_sum, z_sum = sums[0], sums[1], sums[2]          # each (C,)
    dice_all = (2.0 * intersect + smooth) / (z_sum + y_sum + smooth)
    loss_all = 1.0 - dice_all

    total_dice = 0.0
    total_loss = 0.0
    cls_dice, cls_loss = [], []
    for clx in range(C):
        if clx in ignore_index:
            continue
        d = dice_all[clx]
        l = loss_all[clx]
        cls_dice.append(d)
        cls_loss.append(l)
        if weight is not None:
            d = d * weight[clx]
        total_dice = total_dice + d
        total_loss = total_loss + l
    num_valid = num_classes - len(ignore_index)
    return total_dice / num_valid, total_loss / num_valid, cls_dice, cls_loss


# ---------------------------------------------------------------------------
# Pure-JAX references
# ---------------------------------------------------------------------------
def _reference_binary(logits, target, smooth=1e-5):
    intersect = jnp.sum(logits * target)
    y_sum = jnp.sum(target * target)
    z_sum = jnp.sum(logits * logits)
    dice = (2 * intersect + smooth) / (z_sum + y_sum + smooth)
    return dice, 1 - dice


def _reference_dice(logits, target, num_classes, ignore_index=(0,), smooth=1e-5):
    probs = jax.nn.softmax(logits, axis=1)
    D, L = 0.0, 0.0
    for clx in range(target.shape[1]):
        if clx in ignore_index:
            continue
        d, l = _reference_binary(probs[:, clx], target[:, clx], smooth)
        D = D + d
        L = L + l
    nv = num_classes - len(ignore_index)
    return D / nv, L / nv


if __name__ == "__main__":
    key = jax.random.PRNGKey(0)
    k1, k2, k3 = jax.random.split(key, 3)

    # BinaryDice: logits/target of shape (batch, height, width)
    b_logits = jax.nn.sigmoid(
        jax.random.normal(k1, (2, 16, 16), dtype=jnp.float32))
    b_target = (jax.random.uniform(k2, (2, 16, 16)) > 0.5).astype(jnp.float32)

    dice, loss = binary_dice(b_logits, b_target)
    jax.block_until_ready((dice, loss))
    ref_dice, ref_loss = _reference_binary(b_logits, b_target)
    assert jnp.allclose(dice, ref_dice, rtol=1e-5, atol=1e-6), (dice, ref_dice)
    assert jnp.allclose(loss, ref_loss, rtol=1e-5, atol=1e-6), (loss, ref_loss)

    # Dice (multiclass): logits (batch, num_classes, height, width), one-hot target
    num_classes = 4
    m_logits = jax.random.normal(k3, (2, num_classes, 16, 16), dtype=jnp.float32)
    labels = jnp.argmax(jax.random.normal(k2, (2, num_classes, 16, 16)), axis=1)
    m_target = jax.nn.one_hot(labels, num_classes, axis=1, dtype=jnp.float32)

    m_dice, m_loss, cls_dice, cls_loss = dice_forward(
        m_logits, m_target, num_classes)
    jax.block_until_ready((m_dice, m_loss))
    r_dice, r_loss = _reference_dice(m_logits, m_target, num_classes)
    assert jnp.allclose(m_dice, r_dice, rtol=1e-4, atol=1e-6), (m_dice, r_dice)
    assert jnp.allclose(m_loss, r_loss, rtol=1e-4, atol=1e-6), (m_loss, r_loss)
    assert len(cls_dice) == num_classes - 1 and len(cls_loss) == num_classes - 1

    print("KERNEL_OK")
</pallas_src>

<mosaic_0001>
module attributes {stable_mosaic.version = 11 : i64} {
  func.func @_dice_sums_kernel(%arg0: i32, %arg1: i32, %arg2: memref<8x128xf32, #tpu.memory_space<vmem>>, %arg3: memref<8x128xf32, #tpu.memory_space<vmem>>, %arg4: memref<8x128xf32, #tpu.memory_space<vmem>>, %arg5: memref<8x128xf32, #tpu.memory_space<vmem>>, %arg6: memref<8x128xf32, #tpu.memory_space<vmem>>) attributes {dimension_semantics = [#tpu.dimension_semantics<parallel>, #tpu.dimension_semantics<arbitrary>], iteration_bounds = array<i64: 2, 1>, scalar_prefetch = 0 : i64, scratch_operands = 0 : i64, tpu.core_type = #tpu.core_type<tc>, window_params = [{transform_indices = @transform_0, window_bounds = array<i64: 8, 128>}, {transform_indices = @transform_1, window_bounds = array<i64: 8, 128>}, {transform_indices = @transform_2, window_bounds = array<i64: 8, 128>}, {transform_indices = @transform_3, window_bounds = array<i64: 8, 128>}, {transform_indices = @transform_4, window_bounds = array<i64: 8, 128>}]} {
    %c0_i32 = arith.constant 0 : i32
    %0 = arith.cmpi eq, %arg1, %c0_i32 : i32
    %1 = arith.extui %0 : i1 to i32
    %c0_i32_0 = arith.constant 0 : i32
    %2 = arith.cmpi ne, %1, %c0_i32_0 : i32
    scf.if %2 {
      %cst_20 = arith.constant 0.000000e+00 : f32
      %35 = vector.broadcast %cst_20 : f32 to vector<8x128xf32>
      %c0_21 = arith.constant 0 : index
      %c0_22 = arith.constant 0 : index
      %36 = vector.load %arg4[%c0_21, %c0_22] : memref<8x128xf32, #tpu.memory_space<vmem>>, vector<8x128xf32>
      tpu.vector_store %arg4[%c0_21, %c0_22], %35 {strides = array<i32>} : memref<8x128xf32, #tpu.memory_space<vmem>>, vector<8x128xf32>,
      %cst_23 = arith.constant 0.000000e+00 : f32
      %37 = vector.broadcast %cst_23 : f32 to vector<8x128xf32>
      %c0_24 = arith.constant 0 : index
      %c0_25 = arith.constant 0 : index
      %38 = vector.load %arg5[%c0_24, %c0_25] : memref<8x128xf32, #tpu.memory_space<vmem>>, vector<8x128xf32>
      tpu.vector_store %arg5[%c0_24, %c0_25], %37 {strides = array<i32>} : memref<8x128xf32, #tpu.memory_space<vmem>>, vector<8x128xf32>,
      %cst_26 = arith.constant 0.000000e+00 : f32
      %39 = vector.broadcast %cst_26 : f32 to vector<8x128xf32>
      %c0_27 = arith.constant 0 : index
      %c0_28 = arith.constant 0 : index
      %40 = vector.load %arg6[%c0_27, %c0_28] : memref<8x128xf32, #tpu.memory_space<vmem>>, vector<8x128xf32>
      tpu.vector_store %arg6[%c0_27, %c0_28], %39 {strides = array<i32>} : memref<8x128xf32, #tpu.memory_space<vmem>>, vector<8x128xf32>,
    } else {
    }
    %c0 = arith.constant 0 : index
    %c0_1 = arith.constant 0 : index
    %3 = vector.load %arg2[%c0, %c0_1] : memref<8x128xf32, #tpu.memory_space<vmem>>, vector<8x128xf32>
    %c0_2 = arith.constant 0 : index
    %c0_3 = arith.constant 0 : index
    %4 = vector.load %arg3[%c0_2, %c0_3] : memref<8x128xf32, #tpu.memory_space<vmem>>, vector<8x128xf32>
    %c1_i32 = arith.constant 1 : i32
    %5 = arith.muli %arg0, %c1_i32 : i32
    %6 = arith.addi %5, %arg1 : i32
    %c8_i32 = arith.constant 8 : i32
    %7 = arith.muli %6, %c8_i32 : i32
    %8 = tpu.iota {dimensions = array<i32: 0>} : vector<8x128xi32>
    %9 = vector.broadcast %7 : i32 to vector<8x128xi32>
    %10 = arith.addi %9, %8 : vector<8x128xi32>
    %c4_i32 = arith.constant 4 : i32
    %11 = vector.broadcast %c4_i32 : i32 to vector<8x128xi32>
    %12 = arith.cmpi slt, %10, %11 : vector<8x128xi32>
    %cst = arith.constant 0.000000e+00 : f32
    %13 = vector.broadcast %cst : f32 to vector<8x128xf32>
    %14 = arith.select %12, %3, %13 : vector<8x128xi1>, vector<8x128xf32>
    %cst_4 = arith.constant 0.000000e+00 : f32
    %15 = vector.broadcast %cst_4 : f32 to vector<8x128xf32>
    %16 = arith.select %12, %4, %15 : vector<8x128xi1>, vector<8x128xf32>
    %c0_5 = arith.constant 0 : index
    %c0_6 = arith.constant 0 : index
    %17 = vector.load %arg4[%c0_5, %c0_6] : memref<8x128xf32, #tpu.memory_space<vmem>>, vector<8x128xf32>
    %18 = arith.mulf %14, %16 : vector<8x128xf32>
    %19 = vector.shape_cast %18 : vector<8x128xf32> to vector<1x8x128xf32>
    %cst_7 = arith.constant dense<0.000000e+00> : vector<8x128xf32>
    %20 = vector.multi_reduction <add>, %19, %cst_7 [0] : vector<1x8x128xf32> to vector<8x128xf32>
    %21 = arith.addf %17, %20 : vector<8x128xf32>
    %c0_8 = arith.constant 0 : index
    %c0_9 = arith.constant 0 : index
    %22 = vector.load %arg4[%c0_8, %c0_9] : memref<8x128xf32, #tpu.memory_space<vmem>>, vector<8x128xf32>
    tpu.vector_store %arg4[%c0_8, %c0_9], %21 {strides = array<i32>} : memref<8x128xf32, #tpu.memory_space<vmem>>, vector<8x128xf32>,
    %c0_10 = arith.constant 0 : index
    %c0_11 = arith.constant 0 : index
    %23 = vector.load %arg5[%c0_10, %c0_11] : memref<8x128xf32, #tpu.memory_space<vmem>>, vector<8x128xf32>
    %24 = arith.mulf %16, %16 : vector<8x128xf32>
    %25 = vector.shape_cast %24 : vector<8x128xf32> to vector<1x8x128xf32>
    %cst_12 = arith.constant dense<0.000000e+00> : vector<8x128xf32>
    %26 = vector.multi_reduction <add>, %25, %cst_12 [0] : vector<1x8x128xf32> to vector<8x128xf32>
    %27 = arith.addf %23, %26 : vector<8x128xf32>
    %c0_13 = arith.constant 0 : index
    %c0_14 = arith.constant 0 : index
    %28 = vector.load %arg5[%c0_13, %c0_14] : memref<8x128xf32, #tpu.memory_space<vmem>>, vector<8x128xf32>
    tpu.vector_store %arg5[%c0_13, %c0_14], %27 {strides = array<i32>} : memref<8x128xf32, #tpu.memory_space<vmem>>, vector<8x128xf32>,
    %c0_15 = arith.constant 0 : index
    %c0_16 = arith.constant 0 : index
    %29 = vector.load %arg6[%c0_15, %c0_16] : memref<8x128xf32, #tpu.memory_space<vmem>>, vector<8x128xf32>
    %30 = arith.mulf %14, %14 : vector<8x128xf32>
    %31 = vector.shape_cast %30 : vector<8x128xf32> to vector<1x8x128xf32>
    %cst_17 = arith.constant dense<0.000000e+00> : vector<8x128xf32>
    %32 = vector.multi_reduction <add>, %31, %cst_17 [0] : vector<1x8x128xf32> to vector<8x128xf32>
    %33 = arith.addf %29, %32 : vector<8x128xf32>
    %c0_18 = arith.constant 0 : index
    %c0_19 = arith.constant 0 : index
    %34 = vector.load %arg6[%c0_18, %c0_19] : memref<8x128xf32, #tpu.memory_space<vmem>>, vector<8x128xf32>
    tpu.vector_store %arg6[%c0_18, %c0_19], %33 {strides = array<i32>} : memref<8x128xf32, #tpu.memory_space<vmem>>, vector<8x128xf32>,
    return
  }
  func.func @transform_0(%arg0: i32, %arg1: i32) -> (i32, i32) {
    %c1_i32 = arith.constant 1 : i32
    %0 = arith.muli %arg0, %c1_i32 : i32
    %1 = arith.addi %0, %arg1 : i32
    %c0_i32 = arith.constant 0 : i32
    %2 = arith.minsi %1, %c0_i32 : i32
    %c0_i32_0 = arith.constant 0 : i32
    %c0_i32_1 = arith.constant 0 : i32
    return %2, %c0_i32_0 : i32, i32
  }
  func.func @transform_1(%arg0: i32, %arg1: i32) -> (i32, i32) {
    %c1_i32 = arith.constant 1 : i32
    %0 = arith.muli %arg0, %c1_i32 : i32
    %1 = arith.addi %0, %arg1 : i32
    %c0_i32 = arith.constant 0 : i32
    %2 = arith.minsi %1, %c0_i32 : i32
    %c0_i32_0 = arith.constant 0 : i32
    %c0_i32_1 = arith.constant 0 : i32
    return %2, %c0_i32_0 : i32, i32
  }
  func.func @transform_2(%arg0: i32, %arg1: i32) -> (i32, i32) {
    %c0_i32 = arith.constant 0 : i32
    %c0_i32_0 = arith.constant 0 : i32
    return %arg0, %c0_i32 : i32, i32
  }
  func.func @transform_3(%arg0: i32, %arg1: i32) -> (i32, i32) {
    %c0_i32 = arith.constant 0 : i32
    %c0_i32_0 = arith.constant 0 : i32
    return %arg0, %c0_i32 : i32, i32
  }
  func.func @transform_4(%arg0: i32, %arg1: i32) -> (i32, i32) {
    %c0_i32 = arith.constant 0 : i32
    %c0_i32_0 = arith.constant 0 : i32
    return %arg0, %c0_i32 : i32, i32
  }
}

</mosaic_0001>

<llo_original>
// kernel: tpu_custom_call.1
$region0: #{tpu_custom_call.1}
  #allocation0 [shape = 'u32[]', space=smem, size = 0x4, offset = 0x4, fixed_abs, tag = 'smem constant byte address 0x4 - core index']
  #allocation1 [shape = 'u32[72,128]{1,0:T(1,128)}', space=vmem, size = 0x9000, scoped, tag = 'internal scratch']
  %s0 = inlined_call_operand.hbm [shape: f32[4,128], index: 0, kind: input, shape index: {}]
  %s1 = inlined_call_operand.hbm [shape: f32[4,128], index: 1, kind: input, shape index: {}]
  %s2 = inlined_call_operand.hbm [shape: f32[16,128], index: 2, kind: output, shape index: {0}]
  %s3 = inlined_call_operand.hbm [shape: f32[16,128], index: 3, kind: output, shape index: {1}]
  %s4 = inlined_call_operand.hbm [shape: f32[16,128], index: 4, kind: output, shape index: {2}]
  %5 = xla_tuple %s2, %s3, %s4
  %s6 = sld [smem:[#allocation0]]
  $region69: #{tpu_custom_call.1} parent=0
    _
  %s8 = ssub.s32 1, %s6
  %s9 = scalar_select 0, %s8, %s6
  $region1: #{tpu_custom_call.1} parent=0
    #allocation2 [shape = 'u8[8192]{0}', space=vmem, size = 0x2000, scoped, tag = 'input window, operand 0']
    #allocation3 [shape = 's32[2]{0}', space=sflag, size = 0x8, scoped, tag = 'scoped memory for tpu_custom_call.1']
    #allocation4 [shape = 's32[2]{0}', space=sflag, size = 0x8, scoped, tag = 'scoped memory for tpu_custom_call.1']
    #allocation5 [shape = 'u8[8192]{0}', space=vmem, size = 0x2000, scoped, tag = 'input window, operand 1']
    #allocation6 [shape = 's32[2]{0}', space=sflag, size = 0x8, scoped, tag = 'scoped memory for tpu_custom_call.1']
    #allocation7 [shape = 'u8[8192]{0}', space=vmem, size = 0x2000, scoped, tag = 'output window, operand 0']
    #allocation8 [shape = 'u8[8192]{0}', space=vmem, size = 0x2000, scoped, tag = 'output window, operand 1']
    #allocation9 [shape = 's32[2]{0}', space=sflag, size = 0x8, scoped, tag = 'scoped memory for tpu_custom_call.1']
    #allocation10 [shape = 'u8[8192]{0}', space=vmem, size = 0x2000, scoped, tag = 'output window, operand 2']
    %10 = vsyncpa [#allocation3], 0
    %s11 = scalar_lea.sflag [#allocation3], 1
    %12 = vsyncpa %s11, 0
    %13 = vsyncpa [#allocation6], 0
    %s14 = scalar_lea.sflag [#allocation6], 1
    %15 = vsyncpa %s14, 0
    %16 = vsyncpa [#allocation4], 0
    %s17 = scalar_lea.sflag [#allocation4], 1
    %18 = vsyncpa %s17, 0
    %19 = vsyncpa [#allocation9], 0
    %s20 = scalar_lea.sflag [#allocation9], 1
    %21 = vsyncpa %s20, 0
    loop: start=0, step=1, limit=4
    $region2: #{tpu_custom_call.1} parent=1 // loop_pre_header
      _
    $region3: #{tpu_custom_call.1} parent=1 // loop_header
      %s23 = sphi 0, %s27
      %p24 = scmp.ge.s32.totalorder %s23, 4
      %s30 = sphi 0, %s42
      %s31 = sphi 0, %s38
      %s32 = sphi 0, %s30
      %s33 = sphi 0, %s31
      %s34 = sphi 0, %s32
      %s35 = sphi 0, %s33
      %s51 = sphi 0, %s53
      %s54 = sphi 0, %s51
      %s55 = sphi 0, %s54
      %s71 = sphi 0, %s55
      %s83 = sphi 0, %s85
      %s86 = sphi 0, %s83
      %s87 = sphi 0, %s86
      %s103 = sphi 0, %s87
      %s109 = sphi 0, %s111
      %s112 = sphi 0, %s109
      %s113 = sphi 0, %s112
      %s129 = sphi 0, %s113
      %s135 = sphi 0, %s137
      %s138 = sphi 0, %s135
      %s139 = sphi 0, %s138
      %s155 = sphi 0, %s139
      %s161 = sphi 0, %s163
      %s164 = sphi 0, %s161
      %s165 = sphi 0, %s164
      %s181 = sphi 0, %s165
    $region4: #{tpu_custom_call.1} parent=1 // loop_header_branch
      %26 = sbr.rel (%p24) target = $region8
    $region5: #{tpu_custom_call.1} parent=1 // loop_body
      %s28 = ssub.s32 %s23, 1
      %s29 = ssub.s32 %s23, 2
      %s36 = sadd.s32 1, %s31
      %p37 = scmp.ge.s32.totalorder %s36, 1
      %s38 = scalar_select %p37, 0, %s36
      %s39 = sadd.s32 1, %s30
      %s40 = scalar_select %p37, %s39, %s30
      %p41 = scmp.ge.s32.totalorder %s40, 2
      %s42 = scalar_select %p41, 0, %s40
      %s43 = sadd.s32 %s30, %s31
      %p44 = scmp.lt.s32.totalorder %s43, 0
      %s45 = scalar_select %p44, %s43, 0
      %s46 = sadd.s32 %s42, %s38
      %p47 = scmp.lt.s32.totalorder %s46, 0
      %s48 = scalar_select %p47, %s46, 0
      %s49 = ssub.s32 %s45, %s48
      %p50 = scmp.eq.s32.totalorder %s49, 0
      %s52 = sadd.s32 %s51, 1
      %s53 = scalar_select %p50, %s51, %s52
      %p56 = pneg %p50
      %p57 = scmp.eq.s32.totalorder %s23, 1
      %p58 = por %p56, %p57
      %p59 = scmp.ne.s32.totalorder %s51, %s54
      %p60 = scmp.eq.s32.totalorder %s23, 0
      %p61 = por %p59, %p60
      %p62 = scmp.ne.s32.totalorder %s51, %s54
      %p63 = scmp.eq.s32.totalorder %s28, 1
      %p64 = por %p62, %p63
      %p65 = scmp.ne.s32.totalorder %s54, %s55
      %p66 = scmp.eq.s32.totalorder %s28, 0
      %p67 = por %p65, %p66
      %p68 = scmp.ne.s32.totalorder %s54, %s55
      %p69 = scmp.eq.s32.totalorder %s29, 1
      %p70 = por %p68, %p69
      %p72 = scmp.ne.s32.totalorder %s55, %s71
      %p73 = scmp.eq.s32.totalorder %s29, 0
      %p74 = por %p72, %p73
      %s75 = sadd.s32 %s30, %s31
      %p76 = scmp.lt.s32.totalorder %s75, 0
      %s77 = scalar_select %p76, %s75, 0
      %s78 = sadd.s32 %s42, %s38
      %p79 = scmp.lt.s32.totalorder %s78, 0
      %s80 = scalar_select %p79, %s78, 0
      %s81 = ssub.s32 %s77, %s80
      %p82 = scmp.eq.s32.totalorder %s81, 0
      %s84 = sadd.s32 %s83, 1
      %s85 = scalar_select %p82, %s83, %s84
      %p88 = pneg %p82
      %p89 = scmp.eq.s32.totalorder %s23, 1
      %p90 = por %p88, %p89
      %p91 = scmp.ne.s32.totalorder %s83, %s86
      %p92 = scmp.eq.s32.totalorder %s23, 0
      %p93 = por %p91, %p92
      %p94 = scmp.ne.s32.totalorder %s83, %s86
      %p95 = scmp.eq.s32.totalorder %s28, 1
      %p96 = por %p94, %p95
      %p97 = scmp.ne.s32.totalorder %s86, %s87
      %p98 = scmp.eq.s32.totalorder %s28, 0
      %p99 = por %p97, %p98
      %p100 = scmp.ne.s32.totalorder %s86, %s87
      %p101 = scmp.eq.s32.totalorder %s29, 1
      %p102 = por %p100, %p101
      %p104 = scmp.ne.s32.totalorder %s87, %s103
      %p105 = scmp.eq.s32.totalorder %s29, 0
      %p106 = por %p104, %p105
      %s107 = ssub.s32 %s30, %s42
      %p108 = scmp.eq.s32.totalorder %s107, 0
      %s110 = sadd.s32 %s109, 1
      %s111 = scalar_select %p108, %s109, %s110
      %p114 = pneg %p108
      %p115 = scmp.eq.s32.totalorder %s23, 1
      %p116 = por %p114, %p115
      %p117 = scmp.ne.s32.totalorder %s109, %s112
      %p118 = scmp.eq.s32.totalorder %s23, 0
      %p119 = por %p117, %p118
      %p120 = scmp.ne.s32.totalorder %s109, %s112
      %p121 = scmp.eq.s32.totalorder %s28, 1
      %p122 = por %p120, %p121
      %p123 = scmp.ne.s32.totalorder %s112, %s113
      %p124 = scmp.eq.s32.totalorder %s28, 0
      %p125 = por %p123, %p124
      %p126 = scmp.ne.s32.totalorder %s112, %s113
      %p127 = scmp.eq.s32.totalorder %s29, 1
      %p128 = por %p126, %p127
      %p130 = scmp.ne.s32.totalorder %s113, %s129
      %p131 = scmp.eq.s32.totalorder %s29, 0
      %p132 = por %p130, %p131
      %s133 = ssub.s32 %s30, %s42
      %p134 = scmp.eq.s32.totalorder %s133, 0
      %s136 = sadd.s32 %s135, 1
      %s137 = scalar_select %p134, %s135, %s136
      %p140 = pneg %p134
      %p141 = scmp.eq.s32.totalorder %s23, 1
      %p142 = por %p140, %p141
      %p143 = scmp.ne.s32.totalorder %s135, %s138
      %p144 = scmp.eq.s32.totalorder %s23, 0
      %p145 = por %p143, %p144
      %p146 = scmp.ne.s32.totalorder %s135, %s138
      %p147 = scmp.eq.s32.totalorder %s28, 1
      %p148 = por %p146, %p147
      %p149 = scmp.ne.s32.totalorder %s138, %s139
      %p150 = scmp.eq.s32.totalorder %s28, 0
      %p151 = por %p149, %p150
      %p152 = scmp.ne.s32.totalorder %s138, %s139
      %p153 = scmp.eq.s32.totalorder %s29, 1
      %p154 = por %p152, %p153
      %p156 = scmp.ne.s32.totalorder %s139, %s155
      %p157 = scmp.eq.s32.totalorder %s29, 0
      %p158 = por %p156, %p157
      %s159 = ssub.s32 %s30, %s42
      %p160 = scmp.eq.s32.totalorder %s159, 0
      %s162 = sadd.s32 %s161, 1
      %s163 = scalar_select %p160, %s161, %s162
      %p166 = pneg %p160
      %p167 = scmp.eq.s32.totalorder %s23, 1
      %p168 = por %p166, %p167
      %p169 = scmp.ne.s32.totalorder %s161, %s164
      %p170 = scmp.eq.s32.totalorder %s23, 0
      %p171 = por %p169, %p170
      %p172 = scmp.ne.s32.totalorder %s161, %s164
      %p173 = scmp.eq.s32.totalorder %s28, 1
      %p174 = por %p172, %p173
      %p175 = scmp.ne.s32.totalorder %s164, %s165
      %p176 = scmp.eq.s32.totalorder %s28, 0
      %p177 = por %p175, %p176
      %p178 = scmp.ne.s32.totalorder %s164, %s165
      %p179 = scmp.eq.s32.totalorder %s29, 1
      %p180 = por %p178, %p179
      %p182 = scmp.ne.s32.totalorder %s165, %s181
      %p183 = scmp.eq.s32.totalorder %s29, 0
      %p184 = por %p182, %p183
      %p185 = scmp.le.s32.totalorder 1, %s23
      %p186 = scmp.lt.s32.totalorder %s23, 3
      %p187 = pnand %p185, %p186
      %p188 = pneg %p187
      // Predicated region
      $region9: #{tpu_custom_call.1} parent=5 // pred_check
        _
      $region10: #{tpu_custom_call.1} parent=5 // pred_check_branch
        %190 = sbr.rel (%p187) target = $region12
      $region11: #{tpu_custom_call.1} parent=5 // pred_region
        %s191 = ssub.s32 %s23, 1
      $region12: #{tpu_custom_call.1} parent=5 // pred_fallthru
        _
      %p192 = scmp.lt.s32.totalorder %s23, 2
      // Predicated region
      $region13: #{tpu_custom_call.1} parent=5 // pred_check
        %p193 = pneg %p192
      $region14: #{tpu_custom_call.1} parent=5 // pred_check_branch
        %195 = sbr.rel (%p193) target = $region16
      $region15: #{tpu_custom_call.1} parent=5 // pred_region
        // Predicated region
        $region17: #{tpu_custom_call.1} parent=15 // pred_check
          %p196 = pneg %p61
        $region18: #{tpu_custom_call.1} parent=15 // pred_check_branch
          %198 = sbr.rel (%p196) target = $region20
        $region19: #{tpu_custom_call.1} parent=15 // pred_region
          %s199 = sand.u32 %s51, 1
          %s200 = scalar_lea.sflag [#allocation3], %s199
          %s201 = sand.u32 %s51, 1
          %s202 = smul.addr %s201, 8
          %s203 = scalar_lea.vmem [#allocation2], %s202
          %s204 = sadd.s32 %s30, %s31
          %p205 = scmp.lt.s32.totalorder %s204, 0
          %s206 = scalar_select %p205, %s204, 0
          %s207 = smul.u32 2, %s206
          %s208 = ssub.s32 1, %s207
          %s209 = smul.u32 4, %s208
          %s210 = ssub.s32 8, %s209
          %s211 = sshll.u32 %s210, 4
          %212 = vsyncadd %s200, %s211
          %p213 = scmp.ne.s32.totalorder 0, %s209
          %s214 = smul.addr %s207, 4
          %s215 = scalar_lea.hbm %s0, %s214
          %s216 = smul.u32 4, %s208
          %s217 = sshll.u32 %s215, 4
          %s218 = int_to_ptr.hbm [resolvable:$true] %s217
          %s219 = sshll.u32 %s203, 4
          %s220 = int_to_ptr.vmem [resolvable:$true] %s219
          %s221 = sshll.u32 %s216, 4
          %225 = dma.hbm_to_vmem [thread:$0]  (%p213), %s218, %s221, %s220, %s200, 64, 64, 4
        $region20: #{tpu_custom_call.1} parent=15 // pred_fallthru
          _
        // Predicated region
        $region21: #{tpu_custom_call.1} parent=15 // pred_check
          %p226 = pneg %p93
        $region22: #{tpu_custom_call.1} parent=15 // pred_check_branch
          %228 = sbr.rel (%p226) target = $region24
        $region23: #{tpu_custom_call.1} parent=15 // pred_region
          %s229 = sand.u32 %s83, 1
          %s230 = scalar_lea.sflag [#allocation6], %s229
          %s231 = sand.u32 %s83, 1
          %s232 = smul.addr %s231, 8
          %s233 = scalar_lea.vmem [#allocation5], %s232
          %s234 = sadd.s32 %s30, %s31
          %p235 = scmp.lt.s32.totalorder %s234, 0
          %s236 = scalar_select %p235, %s234, 0
          %s237 = smul.u32 2, %s236
          %s238 = ssub.s32 1, %s237
          %s239 = smul.u32 4, %s238
          %s240 = ssub.s32 8, %s239
          %s241 = sshll.u32 %s240, 4
          %242 = vsyncadd %s230, %s241
          %p243 = scmp.ne.s32.totalorder 0, %s239
          %s244 = smul.addr %s237, 4
          %s245 = scalar_lea.hbm %s1, %s244
          %s246 = smul.u32 4, %s238
          %s247 = sshll.u32 %s245, 4
          %s248 = int_to_ptr.hbm [resolvable:$true] %s247
          %s249 = sshll.u32 %s233, 4
          %s250 = int_to_ptr.vmem [resolvable:$true] %s249
          %s251 = sshll.u32 %s246, 4
          %255 = dma.hbm_to_vmem [thread:$0]  (%p243), %s248, %s251, %s250, %s230, 64, 64, 4
        $region24: #{tpu_custom_call.1} parent=15 // pred_fallthru
          _
      $region16: #{tpu_custom_call.1} parent=5 // pred_fallthru
        _
      %p256 = scmp.le.s32.totalorder 1, %s23
      %p257 = scmp.lt.s32.totalorder %s23, 3
      %p258 = pnand %p256, %p257
      %p259 = pneg %p258
      // Predicated region
      $region25: #{tpu_custom_call.1} parent=5 // pred_check
        _
      $region26: #{tpu_custom_call.1} parent=5 // pred_check_branch
        %261 = sbr.rel (%p258) target = $region28
      $region27: #{tpu_custom_call.1} parent=5 // pred_region
        %s262 = ssub.s32 %s23, 1
        %s263 = sand.u32 %s54, 1
        %s264 = scalar_lea.sflag [#allocation3], %s263
        %s265 = sand.u32 %s54, 1
        %s266 = smul.addr %s265, 8
        %s267 = scalar_lea.vmem [#allocation2], %s266
        // Predicated region
        $region29: #{tpu_custom_call.1} parent=27 // pred_check
          %p268 = pneg %p67
        $region30: #{tpu_custom_call.1} parent=27 // pred_check_branch
          %270 = sbr.rel (%p268) target = $region32
        $region31: #{tpu_custom_call.1} parent=27 // pred_region
          %272 = dma.done %s264, 128
        $region32: #{tpu_custom_call.1} parent=27 // pred_fallthru
          _
        %s273 = sand.u32 %s86, 1
        %s274 = scalar_lea.sflag [#allocation6], %s273
        %s275 = sand.u32 %s86, 1
        %s276 = smul.addr %s275, 8
        %s277 = scalar_lea.vmem [#allocation5], %s276
        // Predicated region
        $region33: #{tpu_custom_call.1} parent=27 // pred_check
          %p278 = pneg %p99
        $region34: #{tpu_custom_call.1} parent=27 // pred_check_branch
          %280 = sbr.rel (%p278) target = $region36
        $region35: #{tpu_custom_call.1} parent=27 // pred_region
          %282 = dma.done %s274, 128
        $region36: #{tpu_custom_call.1} parent=27 // pred_fallthru
          _
        %s283 = sand.u32 %s54, 1
        %s284 = scalar_lea.sflag [#allocation3], %s283
        %s285 = sand.u32 %s54, 1
        %s286 = smul.addr %s285, 8
        %s287 = scalar_lea.vmem [#allocation2], %s286
        %p288 = pneg %p67
        %p289 = pneg %p64
        %s290 = sand.u32 %s86, 1
        %s291 = scalar_lea.sflag [#allocation6], %s290
        %s292 = sand.u32 %s86, 1
        %s293 = smul.addr %s292, 8
        %s294 = scalar_lea.vmem [#allocation5], %s293
        %p295 = pneg %p99
        %p296 = pneg %p96
        %p297 = pneg %p125
        %p298 = pneg %p122
        %s299 = sand.u32 %s112, 1
        %s300 = scalar_lea.sflag [#allocation4], %s299
        %s301 = sand.u32 %s112, 1
        %s302 = smul.addr %s301, 8
        %s303 = scalar_lea.vmem [#allocation7], %s302
        %p304 = pneg %p151
        %p305 = pneg %p148
        %s306 = sand.u32 %s28, 1
        %s307 = scalar_lea.sflag [#allocation9], %s306
        %s308 = sand.u32 %s138, 1
        %s309 = smul.addr %s308, 8
        %s310 = scalar_lea.vmem [#allocation8], %s309
        %p311 = pneg %p177
        %p312 = pneg %p174
        %s313 = sand.u32 %s28, 1
        %s314 = scalar_lea.sflag [#allocation9], %s313
        %s315 = sand.u32 %s164, 1
        %s316 = smul.addr %s315, 8
        %s317 = scalar_lea.vmem [#allocation10], %s316
        %s318 = sadd.s32 %s32, %s33
        %p319 = scmp.lt.s32.totalorder %s318, 0
        %s320 = scalar_select %p319, %s318, 0
        %s321 = smul.u32 2, %s320
        %s322 = ssub.s32 1, %s321
        %s323 = smul.u32 4, %s322
        %s324 = sadd.s32 %s32, %s33
        %p325 = scmp.lt.s32.totalorder %s324, 0
        %s326 = scalar_select %p325, %s324, 0
        %s327 = smul.u32 2, %s326
        %s328 = ssub.s32 1, %s327
        %s329 = smul.u32 4, %s328
        %p330 = scmp.eq.s32.totalorder %s33, 0
        // Predicated region
        $region37: #{tpu_custom_call.1} parent=27 // pred_check
          %p331 = pneg %p330
        $region38: #{tpu_custom_call.1} parent=27 // pred_check_branch
          %333 = sbr.rel (%p331) target = $region40
        $region39: #{tpu_custom_call.1} parent=27 // pred_region
          %334 = vst [vmem:[%s303] sm:$0xff] 0.0
          %335 = vst [vmem:[%s310] sm:$0xff] 0.0
          %336 = vst [vmem:[%s317] sm:$0xff] 0.0
        $region40: #{tpu_custom_call.1} parent=27 // pred_fallthru
          _
        %v337 = vld [vmem:[%s267] sm:$0xff]
        %v338 = vld [vmem:[%s277] sm:$0xff]
        %s339 = sadd.s32 %s32, %s33
        %s340 = smul.u32 %s339, 8
        %v341 = vlaneseq
        %v342 = vshrl.u32 %v341, 7
        %v343 = vstv %s340
        %v344 = vadd.s32 %v343, %v342
        %vm345 = vcmp.lt.s32.totalorder %v344, 4
        %v346 = vsel %vm345, %v337, 0.0
        %v347 = vsel %vm345, %v338, 0.0
        %v348 = vld [vmem:[%s303] sm:$0xff]
        %v349 = vmul.f32 %v346, %v347
        %v350 = vadd.f32 %v349, 0.0
        %v351 = vadd.f32 %v348, %v350
        %352 = vst [vmem:[%s303] sm:$0xff] %v351
        %v353 = vld [vmem:[%s310] sm:$0xff]
        %v354 = vmul.f32 %v347, %v347
        %v355 = vadd.f32 %v354, 0.0
        %v356 = vadd.f32 %v353, %v355
        %357 = vst [vmem:[%s310] sm:$0xff] %v356
        %v358 = vld [vmem:[%s317] sm:$0xff]
        %v359 = vmul.f32 %v346, %v346
        %v360 = vadd.f32 %v359, 0.0
        %v361 = vadd.f32 %v358, %v360
        %362 = vst [vmem:[%s317] sm:$0xff] %v361
        %s363 = sand.u32 %s112, 1
        %s364 = scalar_lea.sflag [#allocation4], %s363
        %s365 = sand.u32 %s112, 1
        %s366 = smul.addr %s365, 8
        %s367 = scalar_lea.vmem [#allocation7], %s366
        %s368 = sand.u32 %s28, 1
        %s369 = scalar_lea.sflag [#allocation9], %s368
        %s370 = sand.u32 %s138, 1
        %s371 = smul.addr %s370, 8
        %s372 = scalar_lea.vmem [#allocation8], %s371
        %s373 = sand.u32 %s28, 1
        %s374 = scalar_lea.sflag [#allocation9], %s373
        %s375 = sand.u32 %s164, 1
        %s376 = smul.addr %s375, 8
        %s377 = scalar_lea.vmem [#allocation10], %s376
        // Predicated region
        $region41: #{tpu_custom_call.1} parent=27 // pred_check
          %p378 = pneg %p122
        $region42: #{tpu_custom_call.1} parent=27 // pred_check_branch
          %380 = sbr.rel (%p378) target = $region44
        $region43: #{tpu_custom_call.1} parent=27 // pred_region
          %382 = vsyncadd %s364, 0
          %s383 = smul.addr %s32, 8
          %s384 = scalar_lea.hbm %s2, %s383
          %s386 = sshll.u32 %s367, 4
          %s387 = int_to_ptr.vmem [resolvable:$true] %s386
          %s388 = sshll.u32 %s384, 4
          %s389 = int_to_ptr.hbm [resolvable:$true] %s388
          %391 = dma.vmem_to_hbm [thread:$0]  %s387, 128, %s389, %s364
        $region44: #{tpu_custom_call.1} parent=27 // pred_fallthru
          _
        // Predicated region
        $region45: #{tpu_custom_call.1} parent=27 // pred_check
          %p392 = pneg %p148
        $region46: #{tpu_custom_call.1} parent=27 // pred_check_branch
          %394 = sbr.rel (%p392) target = $region48
        $region47: #{tpu_custom_call.1} parent=27 // pred_region
          %396 = vsyncadd %s369, 0
          %s397 = smul.addr %s32, 8
          %s398 = scalar_lea.hbm %s3, %s397
          %s400 = sshll.u32 %s372, 4
          %s401 = int_to_ptr.vmem [resolvable:$true] %s400
          %s402 = sshll.u32 %s398, 4
          %s403 = int_to_ptr.hbm [resolvable:$true] %s402
          %405 = dma.vmem_to_hbm [thread:$0]  %s401, 128, %s403, %s369
        $region48: #{tpu_custom_call.1} parent=27 // pred_fallthru
          _
        // Predicated region
        $region49: #{tpu_custom_call.1} parent=27 // pred_check
          %p406 = pneg %p174
        $region50: #{tpu_custom_call.1} parent=27 // pred_check_branch
          %408 = sbr.rel (%p406) target = $region52
        $region51: #{tpu_custom_call.1} parent=27 // pred_region
          %410 = vsyncadd %s374, 0
          %s411 = smul.addr %s32, 8
          %s412 = scalar_lea.hbm %s4, %s411
          %s414 = sshll.u32 %s377, 4
          %s415 = int_to_ptr.vmem [resolvable:$true] %s414
          %s416 = sshll.u32 %s412, 4
          %s417 = int_to_ptr.hbm [resolvable:$true] %s416
          %419 = dma.vmem_to_hbm [thread:$0]  %s415, 128, %s417, %s374
        $region52: #{tpu_custom_call.1} parent=27 // pred_fallthru
          _
      $region28: #{tpu_custom_call.1} parent=5 // pred_fallthru
        _
      %p420 = scmp.le.s32.totalorder 2, %s23
      // Predicated region
      $region53: #{tpu_custom_call.1} parent=5 // pred_check
        %p421 = pneg %p420
      $region54: #{tpu_custom_call.1} parent=5 // pred_check_branch
        %423 = sbr.rel (%p421) target = $region56
      $region55: #{tpu_custom_call.1} parent=5 // pred_region
        %s424 = ssub.s32 %s23, 2
        // Predicated region
        $region57: #{tpu_custom_call.1} parent=55 // pred_check
          %p425 = pneg %p128
        $region58: #{tpu_custom_call.1} parent=55 // pred_check_branch
          %427 = sbr.rel (%p425) target = $region60
        $region59: #{tpu_custom_call.1} parent=55 // pred_region
          %s428 = sand.u32 %s113, 1
          %s429 = scalar_lea.sflag [#allocation4], %s428
          %s430 = sand.u32 %s113, 1
          %s431 = smul.addr %s430, 8
          %s432 = scalar_lea.vmem [#allocation7], %s431
          %434 = dma.done %s429, 128
        $region60: #{tpu_custom_call.1} parent=55 // pred_fallthru
          _
        // Predicated region
        $region61: #{tpu_custom_call.1} parent=55 // pred_check
          %p435 = pneg %p154
        $region62: #{tpu_custom_call.1} parent=55 // pred_check_branch
          %437 = sbr.rel (%p435) target = $region64
        $region63: #{tpu_custom_call.1} parent=55 // pred_region
          %s438 = sand.u32 %s29, 1
          %s439 = scalar_lea.sflag [#allocation9], %s438
          %s440 = sand.u32 %s139, 1
          %s441 = smul.addr %s440, 8
          %s442 = scalar_lea.vmem [#allocation8], %s441
          %444 = dma.done %s439, 128
        $region64: #{tpu_custom_call.1} parent=55 // pred_fallthru
          _
        // Predicated region
        $region65: #{tpu_custom_call.1} parent=55 // pred_check
          %p445 = pneg %p180
        $region66: #{tpu_custom_call.1} parent=55 // pred_check_branch
          %447 = sbr.rel (%p445) target = $region68
        $region67: #{tpu_custom_call.1} parent=55 // pred_region
          %s448 = sand.u32 %s29, 1
          %s449 = scalar_lea.sflag [#allocation9], %s448
          %s450 = sand.u32 %s165, 1
          %s451 = smul.addr %s450, 8
          %s452 = scalar_lea.vmem [#allocation10], %s451
          %454 = dma.done %s449, 128
        $region68: #{tpu_custom_call.1} parent=55 // pred_fallthru
          _
      $region56: #{tpu_custom_call.1} parent=5 // pred_fallthru
        _
    $region6: #{tpu_custom_call.1} parent=1 // loop_footer
      %s27 = sadd.s32 1, %s23
    $region7: #{tpu_custom_call.1} parent=1 // loop_footer_branch
      %22 = sbr.rel target = $region3
    $region8: #{tpu_custom_call.1} parent=1 // loop_exit
      _
    %455 = vsyncpa [#allocation3], 1
    %s456 = scalar_lea.sflag [#allocation3], 1
    %457 = vsyncpa %s456, 1
    %458 = vsyncpa [#allocation6], 1
    %s459 = scalar_lea.sflag [#allocation6], 1
    %460 = vsyncpa %s459, 1
    %461 = vsyncpa [#allocation4], 1
    %s462 = scalar_lea.sflag [#allocation4], 1
    %463 = vsyncpa %s462, 1
    %464 = vsyncpa [#allocation9], 1
    %s465 = scalar_lea.sflag [#allocation9], 1
    %466 = vsyncpa %s465, 1

</llo_original>
